<compile_context>
chip_gen: v6e
topology: v6e:2x2x1
jax: 0.10.0
libtpu: 0.0.40
codegen_flags: <defaults>
</compile_context>

<pallas_src>
import functools
import math

import jax
import jax.numpy as jnp
from jax.experimental import pallas as pl
from jax.experimental.pallas import tpu as pltpu


def _round_up(n, m):
    return ((n + m - 1) // m) * m


# ----------------------------------------------------------------------------
# Kernel 1: projection  xp = x @ W  and fused attention projections
#           e_all = xp @ [a_src | a_dst]  (one bf16 MXU matmul, (tile, 2H)).
# ----------------------------------------------------------------------------
def project_kernel(x_ref, w_ref, a_ref, xp_ref, e_ref):
    x = x_ref[...].astype(jnp.bfloat16)                                  # [T, F_in]
    xp = jnp.dot(x, w_ref[...], preferred_element_type=jnp.float32)      # [T, HC] f32
    xp_bf = xp.astype(jnp.bfloat16)
    xp_ref[...] = xp_bf
    # same bf16 xp for logits and aggregation (consistent with PyG's single x')
    e_ref[...] = jnp.dot(xp_bf, a_ref[...], preferred_element_type=jnp.float32)


def gat_project(x, w_bf16, a_bf16, *, tile):
    n, f_in = x.shape
    hc = w_bf16.shape[1]
    two_h = a_bf16.shape[1]
    return pl.pallas_call(
        project_kernel,
        out_shape=(jax.ShapeDtypeStruct((n, hc), jnp.bfloat16),
                   jax.ShapeDtypeStruct((n, two_h), jnp.float32)),
        grid=(n // tile,),
        in_specs=[pl.BlockSpec((tile, f_in), lambda i: (i, 0)),
                  pl.BlockSpec((f_in, hc), lambda i: (0, 0)),
                  pl.BlockSpec((hc, two_h), lambda i: (0, 0))],
        out_specs=(pl.BlockSpec((tile, hc), lambda i: (i, 0)),
                   pl.BlockSpec((tile, two_h), lambda i: (i, 0))),
        compiler_params=pltpu.CompilerParams(dimension_semantics=("parallel",)),
    )(x, w_bf16, a_bf16)


# ----------------------------------------------------------------------------
# Kernel 2: flash-style masked softmax over incoming edges + aggregation.
# Grid: (dst tiles [parallel], src blocks [arbitrary/reduction]).
# Scalar-prefetched occupancy table skips empty (dst tile, src block) pairs.
# ----------------------------------------------------------------------------
def attend_kernel(occ_ref, mask_ref, edst_ref, esrcT_ref, xp_ref, hase_ref,
                  bias_ref, out_ref, m_sc, l_sc, acc_sc, *, H, C):
    di = pl.program_id(0)
    sj = pl.program_id(1)

    @pl.when(sj == 0)
    def _init():
        m_sc[...] = jnp.full_like(m_sc, -1e30)
        l_sc[...] = jnp.zeros_like(l_sc)
        acc_sc[...] = jnp.zeros_like(acc_sc)

    @pl.when(occ_ref[di, sj] > 0)          # skip all compute for empty blocks
    def _block():
        # int8 {0,1} mask -> additive bias (0 on edges, -1e9 off-edges)
        neg = (mask_ref[...].astype(jnp.float32) - 1.0) * 1e9            # [T, S]
        e_dst = edst_ref[...]                                            # [T, H]
        e_srcT = esrcT_ref[...]                                          # [H, S]
        for h in range(H):                 # H is small & static
            s = e_dst[:, h:h + 1] + e_srcT[h:h + 1, :]                   # [T, S]
            s = jnp.maximum(s, 0.2 * s) + neg          # leaky_relu(0.2) + mask
            m_old = m_sc[:, h:h + 1]
            m_new = jnp.maximum(m_old, jnp.max(s, axis=1, keepdims=True))
            corr = jnp.exp(m_old - m_new)
            p = jnp.exp(s - m_new)                                       # [T, S]
            l_sc[:, h:h + 1] = corr * l_sc[:, h:h + 1] + jnp.sum(p, axis=1,
                                                                 keepdims=True)
            acc_sc[:, h * C:(h + 1) * C] = (
                corr * acc_sc[:, h * C:(h + 1) * C]
                + jnp.dot(p.astype(jnp.bfloat16), xp_ref[:, h * C:(h + 1) * C],
                          preferred_element_type=jnp.float32))
            m_sc[:, h:h + 1] = m_new

    @pl.when(sj == pl.num_programs(1) - 1)
    def _finalize():
        has_edge = hase_ref[...]                                         # [T, 1]
        for h in range(H):                 # write per-head slices directly
            l_safe = jnp.maximum(l_sc[:, h:h + 1], 1e-30)
            o = (acc_sc[:, h * C:(h + 1) * C] / l_safe) * has_edge \
                + bias_ref[:, h * C:(h + 1) * C]
            # F.leaky_relu (default slope 0.01) applied after every conv
            out_ref[:, h * C:(h + 1) * C] = jnp.maximum(o, 0.01 * o).astype(
                out_ref.dtype)


def gat_attend(occ, mask_i8, e_dst, e_srcT, xp_bf16, has_edge, bias, *,
               H, C, dst_tile, src_blk):
    n = mask_i8.shape[0]
    hc = H * C
    n_dst, n_src = n // dst_tile, n // src_blk
    kernel = functools.partial(attend_kernel, H=H, C=C)
    grid_spec = pltpu.PrefetchScalarGridSpec(
        num_scalar_prefetch=1,
        grid=(n_dst, n_src),
        in_specs=[
            pl.BlockSpec((dst_tile, src_blk), lambda di, sj, occ_ref: (di, sj)),
            pl.BlockSpec((dst_tile, H),       lambda di, sj, occ_ref: (di, 0)),
            pl.BlockSpec((H, src_blk),        lambda di, sj, occ_ref: (0, sj)),
            pl.BlockSpec((src_blk, hc),       lambda di, sj, occ_ref: (sj, 0)),
            pl.BlockSpec((dst_tile, 1),       lambda di, sj, occ_ref: (di, 0)),
            pl.BlockSpec((1, hc),             lambda di, sj, occ_ref: (0, 0)),
        ],
        out_specs=pl.BlockSpec((dst_tile, hc), lambda di, sj, occ_ref: (di, 0)),
        scratch_shapes=[pltpu.VMEM((dst_tile, H), jnp.float32),   # running max
                        pltpu.VMEM((dst_tile, H), jnp.float32),   # running denom
                        pltpu.VMEM((dst_tile, hc), jnp.float32)], # accumulator
    )
    return pl.pallas_call(
        kernel,
        out_shape=jax.ShapeDtypeStruct((n, hc), jnp.bfloat16),
        grid_spec=grid_spec,
        compiler_params=pltpu.CompilerParams(
            dimension_semantics=("parallel", "arbitrary")),
    )(occ, mask_i8, e_dst, e_srcT, xp_bf16, has_edge, bias)


# ----------------------------------------------------------------------------
# Kernel 3: tiled global mean pool + Linear + log_softmax.
# Sum-pool with an exact {0,1} bf16 matrix, divide by counts in f32 at the end.
# ----------------------------------------------------------------------------
def pool_head_kernel(p_ref, h_ref, invc_ref, wlin_ref, blin_ref, out_ref, acc_sc):
    step = pl.program_id(0)

    @pl.when(step == 0)
    def _init():
        acc_sc[...] = jnp.zeros_like(acc_sc)

    acc_sc[...] += jnp.dot(p_ref[...], h_ref[...],
                           preferred_element_type=jnp.float32)           # [B, HC]

    @pl.when(step == pl.num_programs(0) - 1)
    def _finalize():
        pooled = acc_sc[...] * invc_ref[...]                             # mean pool
        logits = jnp.dot(pooled, wlin_ref[...],
                         preferred_element_type=jnp.float32) + blin_ref[...]
        z = logits - jnp.max(logits, axis=1, keepdims=True)
        lse = jnp.log(jnp.sum(jnp.exp(z), axis=1, keepdims=True))
        out_ref[...] = z - lse


def pool_and_head(p01_bf16, h_bf16, inv_counts, w_lin, b_lin, *, tile):
    b, n = p01_bf16.shape
    hc = h_bf16.shape[1]
    k = w_lin.shape[1]
    return pl.pallas_call(
        pool_head_kernel,
        out_shape=jax.ShapeDtypeStruct((b, k), jnp.float32),
        grid=(n // tile,),
        in_specs=[pl.BlockSpec((b, tile), lambda i: (0, i)),
                  pl.BlockSpec((tile, hc), lambda i: (i, 0)),
                  pl.BlockSpec((b, 1), lambda i: (0, 0)),
                  pl.BlockSpec((hc, k), lambda i: (0, 0)),
                  pl.BlockSpec((1, k), lambda i: (0, 0))],
        out_specs=pl.BlockSpec((b, k), lambda i: (0, 0)),
        scratch_shapes=[pltpu.VMEM((b, hc), jnp.float32)],
        compiler_params=pltpu.CompilerParams(dimension_semantics=("arbitrary",)),
    )(p01_bf16, h_bf16, inv_counts, w_lin, b_lin)


# ----------------------------------------------------------------------------
# Full GAT forward (host glue: densify edges, build occupancy / pooling data)
# ----------------------------------------------------------------------------
def gat_forward(params, x, edge_index, batch, num_graphs, *, heads, hidden,
                dst_tile=256, src_blk=512, proj_tile=512):
    H, C = heads, hidden
    HC = H * C
    N = x.shape[0]

    n0 = _round_up(max(N, 128), 128)
    dst_tile = min(dst_tile, n0)
    src_blk = min(src_blk, n0)
    proj_tile = min(proj_tile, n0)
    assert dst_tile % 32 == 0, "dst_tile must be a multiple of 32 (int8 mask tile)"
    assert src_blk % 128 == 0, "src_blk must be a multiple of 128 (lane tile)"
    assert proj_tile % 8 == 0, "proj_tile must be a multiple of 8"
    n_pad = _round_up(n0, math.lcm(dst_tile, src_blk, proj_tile))
    n_dst, n_src = n_pad // dst_tile, n_pad // src_blk

    src, dst = edge_index[0], edge_index[1]
    # adjacency shipped once as int8 {0,1}: mask[dst, src] = 1 iff edge src->dst
    mask = jnp.zeros((n_pad, n_pad), jnp.int8).at[dst, src].set(1)
    # per-destination "has at least one in-edge" flag (PyG: isolated node -> bias only)
    has_edge = jnp.zeros((n_pad,), jnp.float32).at[dst].set(1.0).reshape(n_pad, 1)
    # per-(dst tile, src block) edge counts -> SMEM via scalar prefetch
    occ = mask.astype(jnp.int32).reshape(n_dst, dst_tile, n_src, src_blk).sum(
        axis=(1, 3))

    h = x
    if n_pad != N:
        h = jnp.pad(h, ((0, n_pad - N), (0, 0)))

    eye = jnp.eye(H, dtype=jnp.float32)
    for layer in params["convs"]:
        w_bf16 = layer["w"].astype(jnp.bfloat16)                   # cast once
        # block-diagonal attention projections, fused into one [HC, 2H] matrix
        asrc = (layer["att_src"][:, :, None] * eye[:, None, :]).reshape(HC, H)
        adst = (layer["att_dst"][:, :, None] * eye[:, None, :]).reshape(HC, H)
        a_bf16 = jnp.concatenate([asrc, adst], axis=1).astype(jnp.bfloat16)

        xp, e_all = gat_project(h, w_bf16, a_bf16, tile=proj_tile)
        e_srcT = e_all[:, :H].T            # tiny (H, N) transpose between kernels
        e_dst = e_all[:, H:]               # (N, H)
        h = gat_attend(occ, mask, e_dst, e_srcT, xp, has_edge, layer["bias"],
                       H=H, C=C, dst_tile=dst_tile, src_blk=src_blk)

    # mean pool = exact {0,1} sum-pool matmul, then multiply by 1/count in f32
    onehot = (batch[None, :] == jnp.arange(num_graphs)[:, None]).astype(jnp.float32)
    counts = jnp.maximum(jnp.sum(onehot, axis=1, keepdims=True), 1.0)
    p01 = jnp.pad(onehot, ((0, 0), (0, n_pad - N))).astype(jnp.bfloat16)
    inv_counts = 1.0 / counts
    return pool_and_head(p01, h, inv_counts, params["w_lin"], params["b_lin"],
                         tile=proj_tile)


# ----------------------------------------------------------------------------
# Deterministic parameter init + example run
# ----------------------------------------------------------------------------
def init_params(key, node_feature_count, class_count, hidden_dimension, heads,
                number_of_hidden_layers=0):
    n_convs = number_of_hidden_layers + 1
    keys = jax.random.split(key, 4 * n_convs + 2)
    scale = 0.1
    convs = []
    in_dim = node_feature_count
    ki = 0
    for _ in range(n_convs):
        convs.append(dict(
            w=scale * jax.random.normal(keys[ki], (in_dim, heads * hidden_dimension),
                                        jnp.float32),
            att_src=scale * jax.random.normal(keys[ki + 1], (heads, hidden_dimension),
                                              jnp.float32),
            att_dst=scale * jax.random.normal(keys[ki + 2], (heads, hidden_dimension),
                                              jnp.float32),
            bias=scale * jax.random.normal(keys[ki + 3], (1, heads * hidden_dimension),
                                           jnp.float32),
        ))
        ki += 4
        in_dim = heads * hidden_dimension
    w_lin = scale * jax.random.normal(keys[ki], (heads * hidden_dimension, class_count),
                                      jnp.float32)
    b_lin = scale * jax.random.normal(keys[ki + 1], (1, class_count), jnp.float32)
    return dict(convs=convs, w_lin=w_lin, b_lin=b_lin)


if __name__ == "__main__":
    # 2 graphs of 128 nodes each (bidirectional rings), 16 input features,
    # hidden_dimension=16, heads=4 (HC=64), 3 classes, 2 GATConv layers.
    # With dst_tile=src_blk=128 the attend grid is (2, 2): the two off-diagonal
    # (cross-graph) blocks have zero edges and exercise the occupancy skip path.
    N_PER_GRAPH, GRAPHS = 128, 2
    N = N_PER_GRAPH * GRAPHS
    F_IN, HIDDEN, HEADS, CLASSES = 16, 16, 4, 3

    key = jax.random.PRNGKey(0)
    k_x, k_p = jax.random.split(key)
    x = jax.random.normal(k_x, (N, F_IN), jnp.float32)

    srcs, dsts = [], []
    for g in range(GRAPHS):
        off = g * N_PER_GRAPH
        for i in range(N_PER_GRAPH):
            j = (i + 1) % N_PER_GRAPH
            srcs += [off + i, off + j]
            dsts += [off + j, off + i]
    edge_index = jnp.array([srcs, dsts], dtype=jnp.int32)          # [2, 512]
    batch = jnp.repeat(jnp.arange(GRAPHS, dtype=jnp.int32), N_PER_GRAPH)

    params = init_params(k_p, F_IN, CLASSES, HIDDEN, HEADS, number_of_hidden_layers=1)

    out = gat_forward(params, x, edge_index, batch, GRAPHS, heads=HEADS, hidden=HIDDEN,
                      dst_tile=128, src_blk=128, proj_tile=128)
    out = jax.block_until_ready(out)

    assert out.shape == (GRAPHS, CLASSES)
    assert bool(jnp.all(jnp.isfinite(out)))
    # log_softmax rows should exponentiate-and-sum to ~1
    assert bool(jnp.all(jnp.abs(jnp.sum(jnp.exp(out), axis=1) - 1.0) < 1e-3))
    print("KERNEL_OK")
</pallas_src>

<mosaic_0001>
module attributes {stable_mosaic.version = 11 : i64} {
  func.func @project_kernel(%arg0: i32, %arg1: memref<128x16xf32, #tpu.memory_space<vmem>>, %arg2: memref<16x64xbf16, #tpu.memory_space<vmem>>, %arg3: memref<64x8xbf16, #tpu.memory_space<vmem>>, %arg4: memref<128x64xbf16, #tpu.memory_space<vmem>>, %arg5: memref<128x8xf32, #tpu.memory_space<vmem>>) attributes {dimension_semantics = [#tpu.dimension_semantics<parallel>], iteration_bounds = array<i64: 2>, scalar_prefetch = 0 : i64, scratch_operands = 0 : i64, tpu.core_type = #tpu.core_type<tc>, window_params = [{transform_indices = @transform_0, window_bounds = array<i64: 128, 16>}, {pipeline_mode = #tpu.pipeline_mode<synchronous>, transform_indices = @transform_1, window_bounds = array<i64: 16, 64>}, {pipeline_mode = #tpu.pipeline_mode<synchronous>, transform_indices = @transform_2, window_bounds = array<i64: 64, 8>}, {transform_indices = @transform_3, window_bounds = array<i64: 128, 64>}, {transform_indices = @transform_4, window_bounds = array<i64: 128, 8>}]} {
    %c0 = arith.constant 0 : index
    %c0_0 = arith.constant 0 : index
    %0 = vector.load %arg1[%c0, %c0_0] : memref<128x16xf32, #tpu.memory_space<vmem>>, vector<128x16xf32>
    %1 = arith.truncf %0 : vector<128x16xf32> to vector<128x16xbf16>
    %c0_1 = arith.constant 0 : index
    %c0_2 = arith.constant 0 : index
    %2 = vector.load %arg2[%c0_1, %c0_2] : memref<16x64xbf16, #tpu.memory_space<vmem>>, vector<16x64xbf16>
    %cst = arith.constant dense<0.000000e+00> : vector<128x64xf32>
    %3 = tpu.matmul %1, %2, %cst {dimension_numbers = #tpu.dot_dimension_numbers<[1], [0], [0], [1], [0, 0, 1, 1], [], []>} : vector<128x16xbf16>, vector<16x64xbf16>, vector<128x64xf32> -> vector<128x64xf32>
    %4 = arith.truncf %3 : vector<128x64xf32> to vector<128x64xbf16>
    %c0_3 = arith.constant 0 : index
    %c0_4 = arith.constant 0 : index
    %5 = vector.load %arg4[%c0_3, %c0_4] : memref<128x64xbf16, #tpu.memory_space<vmem>>, vector<128x64xbf16>
    tpu.vector_store %arg4[%c0_3, %c0_4], %4 {strides = array<i32>} : memref<128x64xbf16, #tpu.memory_space<vmem>>, vector<128x64xbf16>,
    %c0_5 = arith.constant 0 : index
    %c0_6 = arith.constant 0 : index
    %6 = vector.load %arg3[%c0_5, %c0_6] : memref<64x8xbf16, #tpu.memory_space<vmem>>, vector<64x8xbf16>
    %cst_7 = arith.constant dense<0.000000e+00> : vector<128x8xf32>
    %7 = tpu.matmul %4, %6, %cst_7 {dimension_numbers = #tpu.dot_dimension_numbers<[1], [0], [0], [1], [0, 0, 1, 1], [], []>} : vector<128x64xbf16>, vector<64x8xbf16>, vector<128x8xf32> -> vector<128x8xf32>
    %c0_8 = arith.constant 0 : index
    %c0_9 = arith.constant 0 : index
    %8 = vector.load %arg5[%c0_8, %c0_9] : memref<128x8xf32, #tpu.memory_space<vmem>>, vector<128x8xf32>
    tpu.vector_store %arg5[%c0_8, %c0_9], %7 {strides = array<i32>} : memref<128x8xf32, #tpu.memory_space<vmem>>, vector<128x8xf32>,
    return
  }
  func.func @transform_0(%arg0: i32) -> (i32, i32) {
    %c0_i32 = arith.constant 0 : i32
    %c0_i32_0 = arith.constant 0 : i32
    return %arg0, %c0_i32 : i32, i32
  }
  func.func @transform_1(%arg0: i32) -> (i32, i32) {
    %c0_i32 = arith.constant 0 : i32
    %c0_i32_0 = arith.constant 0 : i32
    %c0_i32_1 = arith.constant 0 : i32
    return %c0_i32, %c0_i32_0 : i32, i32
  }
  func.func @transform_2(%arg0: i32) -> (i32, i32) {
    %c0_i32 = arith.constant 0 : i32
    %c0_i32_0 = arith.constant 0 : i32
    %c0_i32_1 = arith.constant 0 : i32
    return %c0_i32, %c0_i32_0 : i32, i32
  }
  func.func @transform_3(%arg0: i32) -> (i32, i32) {
    %c0_i32 = arith.constant 0 : i32
    %c0_i32_0 = arith.constant 0 : i32
    return %arg0, %c0_i32 : i32, i32
  }
  func.func @transform_4(%arg0: i32) -> (i32, i32) {
    %c0_i32 = arith.constant 0 : i32
    %c0_i32_0 = arith.constant 0 : i32
    return %arg0, %c0_i32 : i32, i32
  }
}

</mosaic_0001>

<llo_original>
// kernel: tpu_custom_call.1
$region0: #{tpu_custom_call.1}
  #allocation0 [shape = 'u32[]', space=smem, size = 0x4, offset = 0x4, fixed_abs, tag = 'smem constant byte address 0x4 - core index']
  #allocation1 [shape = 'u32[144,128]{1,0:T(1,128)}', space=vmem, size = 0x12000, scoped, tag = 'internal scratch']
  %s0 = inlined_call_operand.vmem [shape: f32[256,16], index: 0, kind: input, shape index: {}]
  %s1 = inlined_call_operand.vmem [shape: bf16[16,64], index: 1, kind: input, shape index: {}]
  %s2 = inlined_call_operand.vmem [shape: bf16[64,8], index: 2, kind: input, shape index: {}]
  %s3 = inlined_call_operand.vmem [shape: bf16[256,64], index: 3, kind: output, shape index: {0}]
  %s4 = inlined_call_operand.vmem [shape: f32[256,8], index: 4, kind: output, shape index: {1}]
  %5 = xla_tuple %s3, %s4
  %s6 = sld [smem:[#allocation0]]
  $region53: #{tpu_custom_call.1} parent=0
    _
  %s8 = ssub.s32 1, %s6
  %s9 = scalar_select 0, %s8, %s6
  loop: start=0, step=1, limit=4
  $region2: #{tpu_custom_call.1} parent=0 // loop_pre_header
    _
  $region3: #{tpu_custom_call.1} parent=0 // loop_header
    %s11 = sphi 0, %s15
    %p12 = scmp.ge.s32.totalorder %s11, 4
    %s21 = sphi 0, %s23
    %s24 = sphi 0, %s21
    %s25 = sphi 0, %s24
    %s41 = sphi 0, %s25
    %s45 = sphi 0, %s45
    %s47 = sphi 0, %s45
    %s48 = sphi 0, %s47
    %s62 = sphi 0, %s48
    %s66 = sphi 0, %s66
    %s68 = sphi 0, %s66
    %s69 = sphi 0, %s68
    %s83 = sphi 0, %s69
    %s89 = sphi 0, %s91
    %s92 = sphi 0, %s89
    %s93 = sphi 0, %s92
    %s109 = sphi 0, %s93
    %s115 = sphi 0, %s117
    %s118 = sphi 0, %s115
    %s119 = sphi 0, %s118
    %s135 = sphi 0, %s119
  $region4: #{tpu_custom_call.1} parent=0 // loop_header_branch
    %14 = sbr.rel (%p12) target = $region8
  $region5: #{tpu_custom_call.1} parent=0 // loop_body
    %s16 = ssub.s32 %s11, 1
    %s17 = ssub.s32 %s11, 2
    %s18 = sadd.s32 %s11, 1
    %s19 = ssub.s32 %s11, %s18
    %p20 = scmp.eq.s32.totalorder %s19, 0
    %s22 = sadd.s32 %s21, 1
    %s23 = scalar_select %p20, %s21, %s22
    %p26 = pneg %p20
    %p27 = scmp.eq.s32.totalorder %s11, 1
    %p28 = por %p26, %p27
    %p29 = scmp.ne.s32.totalorder %s21, %s24
    %p30 = scmp.eq.s32.totalorder %s11, 0
    %p31 = por %p29, %p30
    %p32 = scmp.ne.s32.totalorder %s21, %s24
    %p33 = scmp.eq.s32.totalorder %s16, 1
    %p34 = por %p32, %p33
    %p35 = scmp.ne.s32.totalorder %s24, %s25
    %p36 = scmp.eq.s32.totalorder %s16, 0
    %p37 = por %p35, %p36
    %p38 = scmp.ne.s32.totalorder %s24, %s25
    %p39 = scmp.eq.s32.totalorder %s17, 1
    %p40 = por %p38, %p39
    %p42 = scmp.ne.s32.totalorder %s25, %s41
    %p43 = scmp.eq.s32.totalorder %s17, 0
    %p44 = por %p42, %p43
    %s46 = sadd.s32 %s45, 1
    %p49 = scmp.eq.s32.totalorder %s11, 1
    %p50 = scmp.ne.s32.totalorder %s45, %s47
    %p51 = scmp.eq.s32.totalorder %s11, 0
    %p52 = por %p50, %p51
    %p53 = scmp.ne.s32.totalorder %s45, %s47
    %p54 = scmp.eq.s32.totalorder %s16, 1
    %p55 = por %p53, %p54
    %p56 = scmp.ne.s32.totalorder %s47, %s48
    %p57 = scmp.eq.s32.totalorder %s16, 0
    %p58 = por %p56, %p57
    %p59 = scmp.ne.s32.totalorder %s47, %s48
    %p60 = scmp.eq.s32.totalorder %s17, 1
    %p61 = por %p59, %p60
    %p63 = scmp.ne.s32.totalorder %s48, %s62
    %p64 = scmp.eq.s32.totalorder %s17, 0
    %p65 = por %p63, %p64
    %s67 = sadd.s32 %s66, 1
    %p70 = scmp.eq.s32.totalorder %s11, 1
    %p71 = scmp.ne.s32.totalorder %s66, %s68
    %p72 = scmp.eq.s32.totalorder %s11, 0
    %p73 = por %p71, %p72
    %p74 = scmp.ne.s32.totalorder %s66, %s68
    %p75 = scmp.eq.s32.totalorder %s16, 1
    %p76 = por %p74, %p75
    %p77 = scmp.ne.s32.totalorder %s68, %s69
    %p78 = scmp.eq.s32.totalorder %s16, 0
    %p79 = por %p77, %p78
    %p80 = scmp.ne.s32.totalorder %s68, %s69
    %p81 = scmp.eq.s32.totalorder %s17, 1
    %p82 = por %p80, %p81
    %p84 = scmp.ne.s32.totalorder %s69, %s83
    %p85 = scmp.eq.s32.totalorder %s17, 0
    %p86 = por %p84, %p85
    %s87 = ssub.s32 %s11, %s18
    %p88 = scmp.eq.s32.totalorder %s87, 0
    %s90 = sadd.s32 %s89, 1
    %s91 = scalar_select %p88, %s89, %s90
    %p94 = pneg %p88
    %p95 = scmp.eq.s32.totalorder %s11, 1
    %p96 = por %p94, %p95
    %p97 = scmp.ne.s32.totalorder %s89, %s92
    %p98 = scmp.eq.s32.totalorder %s11, 0
    %p99 = por %p97, %p98
    %p100 = scmp.ne.s32.totalorder %s89, %s92
    %p101 = scmp.eq.s32.totalorder %s16, 1
    %p102 = por %p100, %p101
    %p103 = scmp.ne.s32.totalorder %s92, %s93
    %p104 = scmp.eq.s32.totalorder %s16, 0
    %p105 = por %p103, %p104
    %p106 = scmp.ne.s32.totalorder %s92, %s93
    %p107 = scmp.eq.s32.totalorder %s17, 1
    %p108 = por %p106, %p107
    %p110 = scmp.ne.s32.totalorder %s93, %s109
    %p111 = scmp.eq.s32.totalorder %s17, 0
    %p112 = por %p110, %p111
    %s113 = ssub.s32 %s11, %s18
    %p114 = scmp.eq.s32.totalorder %s113, 0
    %s116 = sadd.s32 %s115, 1
    %s117 = scalar_select %p114, %s115, %s116
    %p120 = pneg %p114
    %p121 = scmp.eq.s32.totalorder %s11, 1
    %p122 = por %p120, %p121
    %p123 = scmp.ne.s32.totalorder %s115, %s118
    %p124 = scmp.eq.s32.totalorder %s11, 0
    %p125 = por %p123, %p124
    %p126 = scmp.ne.s32.totalorder %s115, %s118
    %p127 = scmp.eq.s32.totalorder %s16, 1
    %p128 = por %p126, %p127
    %p129 = scmp.ne.s32.totalorder %s118, %s119
    %p130 = scmp.eq.s32.totalorder %s16, 0
    %p131 = por %p129, %p130
    %p132 = scmp.ne.s32.totalorder %s118, %s119
    %p133 = scmp.eq.s32.totalorder %s17, 1
    %p134 = por %p132, %p133
    %p136 = scmp.ne.s32.totalorder %s119, %s135
    %p137 = scmp.eq.s32.totalorder %s17, 0
    %p138 = por %p136, %p137
    %p139 = scmp.le.s32.totalorder 1, %s11
    %p140 = scmp.lt.s32.totalorder %s11, 3
    %p141 = pnand %p139, %p140
    %p142 = pneg %p141
    // Predicated region
    $region9: #{tpu_custom_call.1} parent=5 // pred_check
      _
    $region10: #{tpu_custom_call.1} parent=5 // pred_check_branch
      %144 = sbr.rel (%p141) target = $region12
    $region11: #{tpu_custom_call.1} parent=5 // pred_region
      %s145 = ssub.s32 %s11, 1
      // Predicated region
      $region13: #{tpu_custom_call.1} parent=11 // pred_check
        %p146 = pneg %p58
      $region14: #{tpu_custom_call.1} parent=11 // pred_check_branch
        %148 = sbr.rel (%p146) target = $region16
      $region15: #{tpu_custom_call.1} parent=11 // pred_region
        _
      $region16: #{tpu_custom_call.1} parent=11 // pred_fallthru
        _
      // Predicated region
      $region17: #{tpu_custom_call.1} parent=11 // pred_check
        %p149 = pneg %p79
      $region18: #{tpu_custom_call.1} parent=11 // pred_check_branch
        %151 = sbr.rel (%p149) target = $region20
      $region19: #{tpu_custom_call.1} parent=11 // pred_region
        _
      $region20: #{tpu_custom_call.1} parent=11 // pred_fallthru
        _
    $region12: #{tpu_custom_call.1} parent=5 // pred_fallthru
      _
    %p152 = scmp.lt.s32.totalorder %s11, 2
    // Predicated region
    $region21: #{tpu_custom_call.1} parent=5 // pred_check
      %p153 = pneg %p152
    $region22: #{tpu_custom_call.1} parent=5 // pred_check_branch
      %155 = sbr.rel (%p153) target = $region24
    $region23: #{tpu_custom_call.1} parent=5 // pred_region
      // Predicated region
      $region25: #{tpu_custom_call.1} parent=23 // pred_check
        %p156 = pneg %p31
      $region26: #{tpu_custom_call.1} parent=23 // pred_check_branch
        %158 = sbr.rel (%p156) target = $region28
      $region27: #{tpu_custom_call.1} parent=23 // pred_region
        %s159 = smul.u32 16, %s11
        %p160 = scmp.lt.s32.totalorder %s159, 31
        %s161 = scalar_select %p160, %s159, 31
        %s162 = smul.addr %s161, 8
        %s163 = scalar_lea.vmem %s0, %s162
        %s164 = smul.u32 16, %s11
      $region28: #{tpu_custom_call.1} parent=23 // pred_fallthru
        _
    $region24: #{tpu_custom_call.1} parent=5 // pred_fallthru
      _
    %p165 = scmp.le.s32.totalorder 1, %s11
    %p166 = scmp.lt.s32.totalorder %s11, 3
    %p167 = pnand %p165, %p166
    %p168 = pneg %p167
    // Predicated region
    $region29: #{tpu_custom_call.1} parent=5 // pred_check
      _
    $region30: #{tpu_custom_call.1} parent=5 // pred_check_branch
      %170 = sbr.rel (%p167) target = $region32
    $region31: #{tpu_custom_call.1} parent=5 // pred_region
      %s171 = ssub.s32 %s11, 1
      %s172 = smul.u32 16, %s16
      %p173 = scmp.lt.s32.totalorder %s172, 31
      %s174 = scalar_select %p173, %s172, 31
      %s175 = smul.addr %s174, 8
      %s176 = scalar_lea.vmem %s0, %s175
      %p177 = pneg %p37
      %p178 = pneg %p34
      %p179 = pneg %p58
      %p180 = pneg %p55
      %p181 = pneg %p79
      %p182 = pneg %p76
      %p183 = pneg %p105
      %p184 = pneg %p102
      %s185 = smul.u32 16, %s16
      %p186 = scmp.lt.s32.totalorder %s185, 31
      %s187 = scalar_select %p186, %s185, 31
      %s188 = smul.addr %s187, 4
      %s189 = scalar_lea.vmem %s3, %s188
      %p190 = pneg %p131
      %p191 = pneg %p128
      %s192 = smul.u32 16, %s16
      %p193 = scmp.lt.s32.totalorder %s192, 31
      %s194 = scalar_select %p193, %s192, 31
      %s195 = smul.addr %s194, 8
      %s196 = scalar_lea.vmem %s4, %s195
      %s197 = smul.u32 16, %s16
      %p198 = scmp.lt.s32.totalorder %s197, 31
      %s199 = scalar_select %p198, %s197, 31
      %s200 = smul.addr %s199, 8
      %s201 = scalar_lea.vmem %s0, %s200
      %s202 = smul.u32 16, %s16
      %s203 = smul.u32 16, %s16
      %p204 = scmp.lt.s32.totalorder %s203, 31
      %s205 = scalar_select %p204, %s203, 31
      %s206 = smul.addr %s205, 4
      %s207 = scalar_lea.vmem %s3, %s206
      %s208 = smul.u32 16, %s16
      %s209 = smul.u32 16, %s16
      %p210 = scmp.lt.s32.totalorder %s209, 31
      %s211 = scalar_select %p210, %s209, 31
      %s212 = smul.addr %s211, 8
      %s213 = scalar_lea.vmem %s4, %s212
      %s214 = smul.u32 16, %s16
      %v216 = vld [vmem:[%s201] sm:$0xff]
      %v217 = vld [vmem:[%s201 + $0x8] sm:$0xff]
      %v218 = vld [vmem:[%s201 + $0x10] sm:$0xff]
      %v219 = vld [vmem:[%s201 + $0x18] sm:$0xff]
      %v220 = vld [vmem:[%s201 + $0x20] sm:$0xff]
      %v221 = vld [vmem:[%s201 + $0x28] sm:$0xff]
      %v222 = vld [vmem:[%s201 + $0x30] sm:$0xff]
      %v223 = vld [vmem:[%s201 + $0x38] sm:$0xff]
      %v224 = vld [vmem:[%s201 + $0x40] sm:$0xff]
      %v225 = vld [vmem:[%s201 + $0x48] sm:$0xff]
      %v226 = vld [vmem:[%s201 + $0x50] sm:$0xff]
      %v227 = vld [vmem:[%s201 + $0x58] sm:$0xff]
      %v228 = vld [vmem:[%s201 + $0x60] sm:$0xff]
      %v229 = vld [vmem:[%s201 + $0x68] sm:$0xff]
      %v230 = vld [vmem:[%s201 + $0x70] sm:$0xff]
      %v231 = vld [vmem:[%s201 + $0x78] sm:$0xff]
      %v232 = vpack.c.bf16 %v217, %v216
      %v233 = vpack.c.bf16 %v219, %v218
      %v234 = vpack.c.bf16 %v221, %v220
      %v235 = vpack.c.bf16 %v223, %v222
      %v236 = vpack.c.bf16 %v225, %v224
      %v237 = vpack.c.bf16 %v227, %v226
      %v238 = vpack.c.bf16 %v229, %v228
      %v239 = vpack.c.bf16 %v231, %v230
      %v240 = vld [vmem:[%s1] sm:$0xf]
      %v241 = vld [vmem:[%s1 + $0x4] sm:$0xf]
      %v244 = vunpack.c.l.b16 %v240
      %v245 = vunpack.c.l.b16 %v241
      %v246 = vpack.c.b16 %v245, %v244
      %vm248 = vcmask 130048
      %v250 = vsel %vm248, %v232, 0
      %v253 = vsel %vm248, %v233, 0
      %v256 = vsel %vm248, %v234, 0
      %v259 = vsel %vm248, %v235, 0
      %v262 = vsel %vm248, %v236, 0
      %v265 = vsel %vm248, %v237, 0
      %v268 = vsel %vm248, %v238, 0
      %v271 = vsel %vm248, %v239, 0
      %273 = vmatprep.subr.bf16.mxu0 0
      %274 = vmatpush1.bf16.msra.mxu0 0
      %275 = vmatprep.subr.bf16.mxu0 0
      %276 = vmatpush1.bf16.msra.mxu0 0
      %277 = vmatprep.subr.bf16.mxu0 0
      %278 = vmatpush1.bf16.msra.mxu0 0
      %279 = vmatprep.subr.bf16.mxu0 0
      %280 = vmatpush1.bf16.msra.mxu0 0
      %281 = vmatprep.subr.bf16.mxu0 0
      %282 = vmatpush1.bf16.msra.mxu0 0
      %283 = vmatprep.subr.bf16.mxu0 0
      %284 = vmatpush1.bf16.msra.mxu0 0
      %285 = vmatprep.subr.bf16.mxu0 0
      %286 = vmatpush1.bf16.msra.mxu0 0
      %287 = vmatprep.subr.bf16.mxu0 0
      %288 = vmatpush1.bf16.msra.mxu0 %v246
      %289 = vmatprep.subr.bf16.mxu0 0
      %290 = vmatpush2.bf16.msra.mxu0 0
      %291 = vmatprep.subr.bf16.mxu0 0
      %292 = vmatpush2.bf16.msra.mxu0 0
      %293 = vmatprep.subr.bf16.mxu0 0
      %294 = vmatpush2.bf16.msra.mxu0 0
      %295 = vmatprep.subr.bf16.mxu0 0
      %296 = vmatpush2.bf16.msra.mxu0 0
      %297 = vmatprep.subr.bf16.mxu0 0
      %298 = vmatpush2.bf16.msra.mxu0 0
      %299 = vmatprep.subr.bf16.mxu0 0
      %300 = vmatpush2.bf16.msra.mxu0 0
      %301 = vmatprep.subr.bf16.mxu0 0
      %302 = vmatpush2.bf16.msra.mxu0 0
      %303 = vmatprep.subr.bf16.mxu0 0
      %304 = vmatpush2.bf16.msra.mxu0 0
      %305 = vmatprep.mubr.bf16.mxu0 0
      %306 = vmatmul.mubr.bf16.gmra.mxu0 %v250
      %v307 = vpop.f32.mrf.mxu0
      %v308 = vadd.f32 0.0, %v307
      %v309 = vpop.f32.mrf.mxu0
      %v310 = vpop.f32.mrf.mxu0
      %v311 = vadd.f32 0.0, %v310
      %v312 = vpop.f32.mrf.mxu0
      %313 = vmatprep.mubr.bf16.mxu0 0
      %314 = vmatmul.mubr.bf16.gmra.mxu0 %v253
      %v315 = vpop.f32.mrf.mxu0
      %v316 = vadd.f32 0.0, %v315
      %v317 = vpop.f32.mrf.mxu0
      %v318 = vpop.f32.mrf.mxu0
      %v319 = vadd.f32 0.0, %v318
      %v320 = vpop.f32.mrf.mxu0
      %321 = vmatprep.mubr.bf16.mxu0 0
      %322 = vmatmul.mubr.bf16.gmra.mxu0 %v256
      %v323 = vpop.f32.mrf.mxu0
      %v324 = vadd.f32 0.0, %v323
      %v325 = vpop.f32.mrf.mxu0
      %v326 = vpop.f32.mrf.mxu0
      %v327 = vadd.f32 0.0, %v326
      %v328 = vpop.f32.mrf.mxu0
      %329 = vmatprep.mubr.bf16.mxu0 0
      %330 = vmatmul.mubr.bf16.gmra.mxu0 %v259
      %v331 = vpop.f32.mrf.mxu0
      %v332 = vadd.f32 0.0, %v331
      %v333 = vpop.f32.mrf.mxu0
      %v334 = vpop.f32.mrf.mxu0
      %v335 = vadd.f32 0.0, %v334
      %v336 = vpop.f32.mrf.mxu0
      %337 = vmatprep.mubr.bf16.mxu0 0
      %338 = vmatmul.mubr.bf16.gmra.mxu0 %v262
      %v339 = vpop.f32.mrf.mxu0
      %v340 = vadd.f32 0.0, %v339
      %v341 = vpop.f32.mrf.mxu0
      %v342 = vpop.f32.mrf.mxu0
      %v343 = vadd.f32 0.0, %v342
      %v344 = vpop.f32.mrf.mxu0
      %345 = vmatprep.mubr.bf16.mxu0 0
      %346 = vmatmul.mubr.bf16.gmra.mxu0 %v265
      %v347 = vpop.f32.mrf.mxu0
      %v348 = vadd.f32 0.0, %v347
      %v349 = vpop.f32.mrf.mxu0
      %v350 = vpop.f32.mrf.mxu0
      %v351 = vadd.f32 0.0, %v350
      %v352 = vpop.f32.mrf.mxu0
      %353 = vmatprep.mubr.bf16.mxu0 0
      %354 = vmatmul.mubr.bf16.gmra.mxu0 %v268
      %v355 = vpop.f32.mrf.mxu0
      %v356 = vadd.f32 0.0, %v355
      %v357 = vpop.f32.mrf.mxu0
      %v358 = vpop.f32.mrf.mxu0
      %v359 = vadd.f32 0.0, %v358
      %v360 = vpop.f32.mrf.mxu0
      %361 = vmatprep.mubr.bf16.mxu0 0
      %362 = vmatmul.mubr.bf16.gmra.mxu0 %v271
      %v363 = vpop.f32.mrf.mxu0
      %v364 = vadd.f32 0.0, %v363
      %v365 = vpop.f32.mrf.mxu0
      %v366 = vpop.f32.mrf.mxu0
      %v367 = vadd.f32 0.0, %v366
      %v368 = vpop.f32.mrf.mxu0
      %369 = vdwg.mxu0
      %v370 = vpack.c.bf16 %v311, %v308
      %v371 = vpack.c.bf16 %v319, %v316
      %v372 = vpack.c.bf16 %v327, %v324
      %v373 = vpack.c.bf16 %v335, %v332
      %v374 = vpack.c.bf16 %v343, %v340
      %v375 = vpack.c.bf16 %v351, %v348
      %v376 = vpack.c.bf16 %v359, %v356
      %v377 = vpack.c.bf16 %v367, %v364
      %v386 = vunpack.c.l.b16 %v370
      %v387 = vunpack.c.h.b16 %v370
      %v388 = vunpack.c.l.b16 %v371
      %v389 = vunpack.c.h.b16 %v371
      %v390 = vunpack.c.l.b16 %v372
      %v391 = vunpack.c.h.b16 %v372
      %v392 = vunpack.c.l.b16 %v373
      %v393 = vunpack.c.h.b16 %v373
      %v394 = vunpack.c.l.b16 %v374
      %v395 = vunpack.c.h.b16 %v374
      %v396 = vunpack.c.l.b16 %v375
      %v397 = vunpack.c.h.b16 %v375
      %v398 = vunpack.c.l.b16 %v376
      %v399 = vunpack.c.h.b16 %v376
      %v400 = vunpack.c.l.b16 %v377
      %v401 = vunpack.c.h.b16 %v377
      %v402 = vpack.c.b16 %v386, %v386
      %v403 = vpack.c.b16 %v387, %v387
      %v404 = vpack.c.b16 %v388, %v388
      %v405 = vpack.c.b16 %v389, %v389
      %v406 = vpack.c.b16 %v390, %v390
      %v407 = vpack.c.b16 %v391, %v391
      %v408 = vpack.c.b16 %v392, %v392
      %v409 = vpack.c.b16 %v393, %v393
      %v410 = vpack.c.b16 %v394, %v394
      %v411 = vpack.c.b16 %v395, %v395
      %v412 = vpack.c.b16 %v396, %v396
      %v413 = vpack.c.b16 %v397, %v397
      %v414 = vpack.c.b16 %v398, %v398
      %v415 = vpack.c.b16 %v399, %v399
      %v416 = vpack.c.b16 %v400, %v400
      %v417 = vpack.c.b16 %v401, %v401
      %vm434 = vcmask 519168
      %435 = vst.msk [vmem:[%s207] sm:$0xf] %vm434, %v402
      %436 = vst.msk [vmem:[%s207 + $0x4] sm:$0xf] %vm434, %v403
      %437 = vst.msk [vmem:[%s207 + $0x8] sm:$0xf] %vm434, %v404
      %438 = vst.msk [vmem:[%s207 + $0xc] sm:$0xf] %vm434, %v405
      %439 = vst.msk [vmem:[%s207 + $0x10] sm:$0xf] %vm434, %v406
      %440 = vst.msk [vmem:[%s207 + $0x14] sm:$0xf] %vm434, %v407
      %441 = vst.msk [vmem:[%s207 + $0x18] sm:$0xf] %vm434, %v408
      %442 = vst.msk [vmem:[%s207 + $0x1c] sm:$0xf] %vm434, %v409
      %443 = vst.msk [vmem:[%s207 + $0x20] sm:$0xf] %vm434, %v410
      %444 = vst.msk [vmem:[%s207 + $0x24] sm:$0xf] %vm434, %v411
      %445 = vst.msk [vmem:[%s207 + $0x28] sm:$0xf] %vm434, %v412
      %446 = vst.msk [vmem:[%s207 + $0x2c] sm:$0xf] %vm434, %v413
      %447 = vst.msk [vmem:[%s207 + $0x30] sm:$0xf] %vm434, %v414
      %448 = vst.msk [vmem:[%s207 + $0x34] sm:$0xf] %vm434, %v415
      %449 = vst.msk [vmem:[%s207 + $0x38] sm:$0xf] %vm434, %v416
      %450 = vst.msk [vmem:[%s207 + $0x3c] sm:$0xf] %vm434, %v417
      %v451 = vld [vmem:[%s2] sm:$0xf]
      %v452 = vld [vmem:[%s2 + $0x4] sm:$0xf]
      %v453 = vld [vmem:[%s2 + $0x8] sm:$0xf]
      %v454 = vld [vmem:[%s2 + $0xc] sm:$0xf]
      %v455 = vld [vmem:[%s2 + $0x10] sm:$0xf]
      %v456 = vld [vmem:[%s2 + $0x14] sm:$0xf]
      %v457 = vld [vmem:[%s2 + $0x18] sm:$0xf]
      %v458 = vld [vmem:[%s2 + $0x1c] sm:$0xf]
      %v467 = vunpack.c.l.b16 %v451
      %v468 = vunpack.c.l.b16 %v452
      %v469 = vunpack.c.l.b16 %v453
      %v470 = vunpack.c.l.b16 %v454
      %v471 = vunpack.c.l.b16 %v455
      %v472 = vunpack.c.l.b16 %v456
      %v473 = vunpack.c.l.b16 %v457
      %v474 = vunpack.c.l.b16 %v458
      %v475 = vpack.c.b16 %v468, %v467
      %v476 = vpack.c.b16 %v470, %v469
      %v477 = vpack.c.b16 %v472, %v471
      %v478 = vpack.c.b16 %v474, %v473
      %vm483 = vcmask 523264
      %v485 = vsel %vm483, %v370, 0
      %v488 = vsel %vm483, %v371, 0
      %v491 = vsel %vm483, %v372, 0
      %v494 = vsel %vm483, %v373, 0
      %v497 = vsel %vm483, %v374, 0
      %v500 = vsel %vm483, %v375, 0
      %v503 = vsel %vm483, %v376, 0
      %v506 = vsel %vm483, %v377, 0
      %508 = vmatprep.subr.bf16.mxu0 0
      %509 = vmatpush1.bf16.msra.mxu0 0
      %510 = vmatprep.subr.bf16.mxu0 0
      %511 = vmatpush1.bf16.msra.mxu0 0
      %512 = vmatprep.subr.bf16.mxu0 0
      %513 = vmatpush1.bf16.msra.mxu0 0
      %514 = vmatprep.subr.bf16.mxu0 0
      %515 = vmatpush1.bf16.msra.mxu0 0
      %516 = vmatprep.subr.bf16.mxu0 0
      %517 = vmatpush1.bf16.msra.mxu0 %v478
      %518 = vmatprep.subr.bf16.mxu0 0
      %519 = vmatpush1.bf16.msra.mxu0 %v477
      %520 = vmatprep.subr.bf16.mxu0 0
      %521 = vmatpush1.bf16.msra.mxu0 %v476
      %522 = vmatprep.subr.bf16.mxu0 0
      %523 = vmatpush1.bf16.msra.mxu0 %v475
      %524 = vmatprep.subr.bf16.mxu0 0
      %525 = vmatpush2.bf16.msra.mxu0 0
      %526 = vmatprep.subr.bf16.mxu0 0
      %527 = vmatpush2.bf16.msra.mxu0 0
      %528 = vmatprep.subr.bf16.mxu0 0
      %529 = vmatpush2.bf16.msra.mxu0 0
      %530 = vmatprep.subr.bf16.mxu0 0
      %531 = vmatpush2.bf16.msra.mxu0 0
      %532 = vmatprep.subr.bf16.mxu0 0
      %533 = vmatpush2.bf16.msra.mxu0 0
      %534 = vmatprep.subr.bf16.mxu0 0
      %535 = vmatpush2.bf16.msra.mxu0 0
      %536 = vmatprep.subr.bf16.mxu0 0
      %537 = vmatpush2.bf16.msra.mxu0 0
      %538 = vmatprep.subr.bf16.mxu0 0
      %539 = vmatpush2.bf16.msra.mxu0 0
      %540 = vmatprep.mubr.bf16.mxu0 0
      %541 = vmatmul.mubr.bf16.gmra.mxu0 %v485
      %v542 = vpop.f32.mrf.mxu0
      %v543 = vadd.f32 0.0, %v542
      %v544 = vpop.f32.mrf.mxu0
      %v545 = vpop.f32.mrf.mxu0
      %v546 = vadd.f32 0.0, %v545
      %v547 = vpop.f32.mrf.mxu0
      %548 = vmatprep.mubr.bf16.mxu0 0
      %549 = vmatmul.mubr.bf16.gmra.mxu0 %v488
      %v550 = vpop.f32.mrf.mxu0
      %v551 = vadd.f32 0.0, %v550
      %v552 = vpop.f32.mrf.mxu0
      %v553 = vpop.f32.mrf.mxu0
      %v554 = vadd.f32 0.0, %v553
      %v555 = vpop.f32.mrf.mxu0
      %556 = vmatprep.mubr.bf16.mxu0 0
      %557 = vmatmul.mubr.bf16.gmra.mxu0 %v491
      %v558 = vpop.f32.mrf.mxu0
      %v559 = vadd.f32 0.0, %v558
      %v560 = vpop.f32.mrf.mxu0
      %v561 = vpop.f32.mrf.mxu0
      %v562 = vadd.f32 0.0, %v561
      %v563 = vpop.f32.mrf.mxu0
      %564 = vmatprep.mubr.bf16.mxu0 0
      %565 = vmatmul.mubr.bf16.gmra.mxu0 %v494
      %v566 = vpop.f32.mrf.mxu0
      %v567 = vadd.f32 0.0, %v566
      %v568 = vpop.f32.mrf.mxu0
      %v569 = vpop.f32.mrf.mxu0
      %v570 = vadd.f32 0.0, %v569
      %v571 = vpop.f32.mrf.mxu0
      %572 = vmatprep.mubr.bf16.mxu0 0
      %573 = vmatmul.mubr.bf16.gmra.mxu0 %v497
      %v574 = vpop.f32.mrf.mxu0
      %v575 = vadd.f32 0.0, %v574
      %v576 = vpop.f32.mrf.mxu0
      %v577 = vpop.f32.mrf.mxu0
      %v578 = vadd.f32 0.0, %v577
      %v579 = vpop.f32.mrf.mxu0
      %580 = vmatprep.mubr.bf16.mxu0 0
      %581 = vmatmul.mubr.bf16.gmra.mxu0 %v500
      %v582 = vpop.f32.mrf.mxu0
      %v583 = vadd.f32 0.0, %v582
      %v584 = vpop.f32.mrf.mxu0
      %v585 = vpop.f32.mrf.mxu0
      %v586 = vadd.f32 0.0, %v585
      %v587 = vpop.f32.mrf.mxu0
      %588 = vmatprep.mubr.bf16.mxu0 0
      %589 = vmatmul.mubr.bf16.gmra.mxu0 %v503
      %v590 = vpop.f32.mrf.mxu0
      %v591 = vadd.f32 0.0, %v590
      %v592 = vpop.f32.mrf.mxu0
      %v593 = vpop.f32.mrf.mxu0
      %v594 = vadd.f32 0.0, %v593
      %v595 = vpop.f32.mrf.mxu0
      %596 = vmatprep.mubr.bf16.mxu0 0
      %597 = vmatmul.mubr.bf16.gmra.mxu0 %v506
      %v598 = vpop.f32.mrf.mxu0
      %v599 = vadd.f32 0.0, %v598
      %v600 = vpop.f32.mrf.mxu0
      %v601 = vpop.f32.mrf.mxu0
      %v602 = vadd.f32 0.0, %v601
      %v603 = vpop.f32.mrf.mxu0
      %604 = vdwg.mxu0
      %vm605 = vcmask 64512
      %606 = vst.msk [vmem:[%s213] sm:$0xff] %vm605, %v543
      %607 = vst.msk [vmem:[%s213 + $0x8] sm:$0xff] %vm605, %v546
      %608 = vst.msk [vmem:[%s213 + $0x10] sm:$0xff] %vm605, %v551
      %609 = vst.msk [vmem:[%s213 + $0x18] sm:$0xff] %vm605, %v554
      %610 = vst.msk [vmem:[%s213 + $0x20] sm:$0xff] %vm605, %v559
      %611 = vst.msk [vmem:[%s213 + $0x28] sm:$0xff] %vm605, %v562
      %612 = vst.msk [vmem:[%s213 + $0x30] sm:$0xff] %vm605, %v567
      %613 = vst.msk [vmem:[%s213 + $0x38] sm:$0xff] %vm605, %v570
      %614 = vst.msk [vmem:[%s213 + $0x40] sm:$0xff] %vm605, %v575
      %615 = vst.msk [vmem:[%s213 + $0x48] sm:$0xff] %vm605, %v578
      %616 = vst.msk [vmem:[%s213 + $0x50] sm:$0xff] %vm605, %v583
      %617 = vst.msk [vmem:[%s213 + $0x58] sm:$0xff] %vm605, %v586
      %618 = vst.msk [vmem:[%s213 + $0x60] sm:$0xff] %vm605, %v591
      %619 = vst.msk [vmem:[%s213 + $0x68] sm:$0xff] %vm605, %v594
      %620 = vst.msk [vmem:[%s213 + $0x70] sm:$0xff] %vm605, %v599
      %621 = vst.msk [vmem:[%s213 + $0x78] sm:$0xff] %vm605, %v602
      %s622 = smul.u32 16, %s16
      %p623 = scmp.lt.s32.totalorder %s622, 31
      %s624 = scalar_select %p623, %s622, 31
      %s625 = smul.addr %s624, 4
      %s626 = scalar_lea.vmem %s3, %s625
      %s627 = smul.u32 16, %s16
      %p628 = scmp.lt.s32.totalorder %s627, 31
      %s629 = scalar_select %p628, %s627, 31
      %s630 = smul.addr %s629, 8
      %s631 = scalar_lea.vmem %s4, %s630
      // Predicated region
      $region33: #{tpu_custom_call.1} parent=31 // pred_check
        %p632 = pneg %p102
      $region34: #{tpu_custom_call.1} parent=31 // pred_check_branch
        %634 = sbr.rel (%p632) target = $region36
      $region35: #{tpu_custom_call.1} parent=31 // pred_region
        %s635 = smul.u32 16, %s16
      $region36: #{tpu_custom_call.1} parent=31 // pred_fallthru
        _
      // Predicated region
      $region37: #{tpu_custom_call.1} parent=31 // pred_check
        %p636 = pneg %p128
      $region38: #{tpu_custom_call.1} parent=31 // pred_check_branch
        %638 = sbr.rel (%p636) target = $region40
      $region39: #{tpu_custom_call.1} parent=31 // pred_region
        %s639 = smul.u32 16, %s16
      $region40: #{tpu_custom_call.1} parent=31 // pred_fallthru
        _
    $region32: #{tpu_custom_call.1} parent=5 // pred_fallthru
      _
    %p640 = scmp.le.s32.totalorder 2, %s11
    // Predicated region
    $region41: #{tpu_custom_call.1} parent=5 // pred_check
      %p641 = pneg %p640
    $region42: #{tpu_custom_call.1} parent=5 // pred_check_branch
      %643 = sbr.rel (%p641) target = $region44
    $region43: #{tpu_custom_call.1} parent=5 // pred_region
      %s644 = ssub.s32 %s11, 2
      // Predicated region
      $region45: #{tpu_custom_call.1} parent=43 // pred_check
        %p645 = pneg %p108
      $region46: #{tpu_custom_call.1} parent=43 // pred_check_branch
        %647 = sbr.rel (%p645) target = $region48
      $region47: #{tpu_custom_call.1} parent=43 // pred_region
        %s648 = smul.u32 16, %s17
        %p649 = scmp.lt.s32.totalorder %s648, 31
        %s650 = scalar_select %p649, %s648, 31
        %s651 = smul.addr %s650, 4
        %s652 = scalar_lea.vmem %s3, %s651
      $region48: #{tpu_custom_call.1} parent=43 // pred_fallthru
        _
      // Predicated region
      $region49: #{tpu_custom_call.1} parent=43 // pred_check
        %p653 = pneg %p134
      $region50: #{tpu_custom_call.1} parent=43 // pred_check_branch
        %655 = sbr.rel (%p653) target = $region52
      $region51: #{tpu_custom_call.1} parent=43 // pred_region
        %s656 = smul.u32 16, %s17
        %p657 = scmp.lt.s32.totalorder %s656, 31
        %s658 = scalar_select %p657, %s656, 31
        %s659 = smul.addr %s658, 8
        %s660 = scalar_lea.vmem %s4, %s659
      $region52: #{tpu_custom_call.1} parent=43 // pred_fallthru
        _
    $region44: #{tpu_custom_call.1} parent=5 // pred_fallthru
      _
  $region6: #{tpu_custom_call.1} parent=0 // loop_footer
    %s15 = sadd.s32 1, %s11
  $region7: #{tpu_custom_call.1} parent=0 // loop_footer_branch
    %10 = sbr.rel target = $region3
  $region8: #{tpu_custom_call.1} parent=0 // loop_exit
    _

</llo_original>
